<compile_context>
chip_gen: v5e
topology: v5e:2x2
jax: 0.10.0
libtpu: 0.0.40
codegen_flags: <defaults>
</compile_context>

<pallas_src>
import functools
import math

import jax
import jax.numpy as jnp
from jax import lax
from jax.experimental import pallas as pl
from jax.experimental.pallas import tpu as pltpu

EPS = 0.01

# Target bytes of *real* DMA payload per grid step (review: aim for >= 1-4 MiB).
_PAYLOAD_TARGET_BYTES = 2 * 1024 * 1024
# Budget for the double-buffered streamed input tiles; the footprint estimate
# includes sublane padding (a (R, tn) tile with R < 8/16 still occupies a full
# sublane tile).  Kept <= 16 MiB so it is safe on every generation.
_VMEM_INPUT_BUDGET_BYTES = 16 * 1024 * 1024


def _gram_kernel(y_ref, gram_ref, acc_ref, *, tn, n, steps, need_mask):
    """Accumulate one N-split's partial Gram matrix G = Y @ Y.T.

    y_ref:    (R, tn) streamed block (R = B*C folded rows), f32 or bf16.
    gram_ref: (1, R, R) f32 output block for this split.
    acc_ref:  (R, R) f32 VMEM accumulator, resident across the inner N axis.
    """
    h = pl.program_id(0)   # N-split index ("parallel" -> megacore on v7x)
    k = pl.program_id(1)   # chunk index inside the split ("arbitrary")

    @pl.when(k == 0)
    def _init():
        acc_ref[...] = jnp.zeros_like(acc_ref)

    yb = y_ref[...]        # (R, tn)
    if need_mask:
        # Zero lanes past the true N. Covers both the partial tail block and
        # "phantom" steps whose block index was clamped in the index_map --
        # OOB block reads return unspecified data, so masking is required.
        valid = jnp.int32(n) - (h * steps + k) * tn
        lane = lax.broadcasted_iota(jnp.int32, yb.shape, 1)
        yb = jnp.where(lane < valid, yb, jnp.zeros_like(yb))

    # Partial Gram over this chunk (contraction on N); bf16 contracts natively
    # on the MXU with an f32 accumulator.
    # TODO(synk): if a bundle audit shows the per-chunk RHS transpose (XLU)
    # binding after the tile-size bump, switch to a VPU formulation
    # (C*(C+1)/2 row products + lane reductions) for C <= 4.
    acc_ref[...] += jnp.einsum("cn,dn->cd", yb, yb,
                               preferred_element_type=jnp.float32)

    @pl.when(k == steps - 1)
    def _finalize():
        gram_ref[...] = acc_ref[...][None]


def _iic_finalize_kernel(gram_ref, loss_ref, *, b, c, scale, eps):
    """Combine split partial Grams and compute the per-batch IIC loss."""
    r = b * c
    g = jnp.sum(gram_ref[...], axis=0)                         # (R, R)
    p = jnp.maximum(g * jnp.float32(scale), jnp.float32(eps))

    row = lax.broadcasted_iota(jnp.int32, (r, r), 0)
    col = lax.broadcasted_iota(jnp.int32, (r, r), 1)
    diag = row == col
    same_batch = (row // c) == (col // c)

    # log(Pideal) is a compile-time constant pattern: 0 on the diagonal,
    # log(EPS) off-diagonal (eye clamped below at EPS).
    log_pideal = jnp.where(diag, jnp.float32(0.0), jnp.float32(math.log(eps)))
    pideal = jnp.where(diag, jnp.float32(1.0), jnp.float32(eps))
    # F.kl_div(P.log(), Pideal.log(), log_target=True) = Pideal*(logPideal-logP)
    kl = pideal * (log_pideal - jnp.log(p))
    # Keep only the per-batch diagonal (C, C) blocks of the folded Gram.
    kl = jnp.where(same_batch, kl, jnp.float32(0.0))

    col_sum = jnp.sum(kl, axis=0, keepdims=True)               # (1, R)
    # Selector: sel[b, r] = 1 iff folded row r belongs to batch b.
    sel = (lax.broadcasted_iota(jnp.int32, (b, r), 1) // c ==
           lax.broadcasted_iota(jnp.int32, (b, r), 0)).astype(jnp.float32)
    loss = jnp.sum(sel * col_sum, axis=1, keepdims=True)       # (B, 1)
    loss = loss * jnp.float32(1.0 / (c * c))                   # mean over (C, C)
    loss_ref[...] = jnp.broadcast_to(loss, loss_ref.shape)


def iic_loss(y: jax.Array) -> jax.Array:
    """Invariant Information Clustering loss. y: (B, C, N) -> (B,) float32."""
    B, C, N = y.shape
    if y.dtype not in (jnp.float32, jnp.bfloat16):
        y = y.astype(jnp.float32)        # do NOT upcast bf16: stream it as-is
    itemsize = y.dtype.itemsize
    R = B * C
    yf = y.reshape(R, N)                 # leading-dim merge: no HBM copy
    scale = float(C) / float(N)          # uses the true (unpadded) N

    # ---- tile-size selection -------------------------------------------------
    sublane_pack = 8 * (4 // itemsize)                       # 8 (f32) / 16 (bf16)
    r_pad = ((R + sublane_pack - 1) // sublane_pack) * sublane_pack
    n128 = ((N + 127) // 128) * 128
    tn_payload = max(128, (_PAYLOAD_TARGET_BYTES // (R * itemsize)) // 128 * 128)
    tn_vmem = max(128, (_VMEM_INPUT_BUDGET_BYTES // (2 * r_pad * itemsize)) // 128 * 128)
    tn = min(tn_payload, tn_vmem, n128)

    n_blocks = (N + tn - 1) // tn
    nsplit = 2 if n_blocks >= 2 else 1        # 2-way N split -> v7x megacore
    steps = (n_blocks + nsplit - 1) // nsplit
    need_clamp = nsplit * steps > n_blocks    # phantom steps re-read last block
    need_mask = nsplit * steps * tn != N      # partial tail and/or phantom steps

    if need_clamp:
        y_index = lambda h, k: (0, jnp.minimum(h * steps + k, n_blocks - 1))
    else:
        y_index = lambda h, k: (0, h * steps + k)

    vmem_limit = int(max(32 * 1024 * 1024,
                         2 * r_pad * tn * itemsize + 8 * 1024 * 1024))
    # NOTE: if steps is very small, pipeline_mode=pl.Buffered(3) on the input
    # BlockSpec can hide more DMA latency; omitted here to stay conservative.

    gram_parts = pl.pallas_call(
        functools.partial(_gram_kernel, tn=tn, n=N, steps=steps,
                          need_mask=need_mask),
        out_shape=jax.ShapeDtypeStruct((nsplit, R, R), jnp.float32),
        grid=(nsplit, steps),
        in_specs=[pl.BlockSpec((R, tn), y_index)],
        out_specs=pl.BlockSpec((1, R, R), lambda h, k: (h, 0, 0)),
        scratch_shapes=[pltpu.VMEM((R, R), jnp.float32)],
        compiler_params=pltpu.CompilerParams(
            dimension_semantics=("parallel", "arbitrary"),
            vmem_limit_bytes=vmem_limit),
    )(yf)

    # Tiny epilogue kernel: combine splits, clamp, KL, per-batch mean.
    loss_tile = pl.pallas_call(
        functools.partial(_iic_finalize_kernel, b=B, c=C, scale=scale, eps=EPS),
        out_shape=jax.ShapeDtypeStruct((B, 128), jnp.float32),
    )(gram_parts)
    return loss_tile[:, 0]


def _iic_loss_ref(y: jax.Array) -> jax.Array:
    """Pure-JAX reference (mirrors the PyTorch code) for a correctness check."""
    B, C, N = y.shape
    P = jnp.einsum("bcn,bdn->bcd", y * (C / N), y)
    P = jnp.maximum(P, EPS)
    pideal = jnp.maximum(jnp.eye(C, dtype=jnp.float32), EPS)[None]
    kl = pideal * (jnp.log(pideal) - jnp.log(P))
    return jnp.mean(kl, axis=(1, 2))


# TODO(synk): the rest of MaskModel.forward (UNet, conv2d/GroupNorm color
# transform, CutOut, mean-separation loss) is outside the scope of this kernel;
# only the InvariantInformationClusteringLoss hot path is implemented here.

if __name__ == "__main__":
    key = jax.random.PRNGKey(0)
    k1, k2, k3 = jax.random.split(key, 3)

    # Case 1: tiny (B, C, N) = (2, 4, 16): N < 128 -> boundary block + masking.
    y1 = jax.nn.softmax(jax.random.normal(k1, (2, 4, 16), jnp.float32), axis=1)
    # Case 2: MaskModel-like: 2 classes, N = 16*16 spatial positions.
    y2 = jax.nn.softmax(jax.random.normal(k2, (2, 2, 256), jnp.float32), axis=1)
    # Case 3: large N exercising the 2-way split, clamped phantom step and the
    # partial tail mask (N not a multiple of tn).
    y3 = jax.nn.softmax(jax.random.normal(k3, (2, 2, 300000), jnp.float32), axis=1)

    for y in (y1, y2, y3):
        loss = jax.block_until_ready(iic_loss(y))
        ref = jax.block_until_ready(_iic_loss_ref(y))
        assert loss.shape == (y.shape[0],)
        assert jnp.allclose(loss, ref, atol=1e-4, rtol=1e-4), (loss, ref)

    print("KERNEL_OK")
</pallas_src>

<mosaic_0001>
module attributes {stable_mosaic.version = 11 : i64} {
  func.func @_gram_kernel(%arg0: i32, %arg1: i32, %arg2: memref<8x128xf32, #tpu.memory_space<vmem>>, %arg3: memref<1x8x8xf32, #tpu.memory_space<vmem>>, %arg4: memref<8x8xf32, #tpu.memory_space<vmem>>) attributes {dimension_semantics = [#tpu.dimension_semantics<parallel>, #tpu.dimension_semantics<arbitrary>], iteration_bounds = array<i64: 1, 1>, scalar_prefetch = 0 : i64, scratch_operands = 1 : i64, tpu.core_type = #tpu.core_type<tc>, window_params = [{transform_indices = @transform_0, window_bounds = array<i64: 8, 128>}, {transform_indices = @transform_1, window_bounds = array<i64: 1, 8, 8>}]} {
    %c0_i32 = arith.constant 0 : i32
    %0 = arith.cmpi eq, %arg1, %c0_i32 : i32
    %1 = arith.extui %0 : i1 to i32
    %c0_i32_0 = arith.constant 0 : i32
    %2 = arith.cmpi ne, %1, %c0_i32_0 : i32
    scf.if %2 {
      %cst_9 = arith.constant 0.000000e+00 : f32
      %20 = vector.broadcast %cst_9 : f32 to vector<8x8xf32>
      %c0_10 = arith.constant 0 : index
      %c0_11 = arith.constant 0 : index
      %21 = vector.load %arg4[%c0_10, %c0_11] : memref<8x8xf32, #tpu.memory_space<vmem>>, vector<8x8xf32>
      tpu.vector_store %arg4[%c0_10, %c0_11], %20 {strides = array<i32>} : memref<8x8xf32, #tpu.memory_space<vmem>>, vector<8x8xf32>,
    } else {
    }
    %c0 = arith.constant 0 : index
    %c0_1 = arith.constant 0 : index
    %3 = vector.load %arg2[%c0, %c0_1] : memref<8x128xf32, #tpu.memory_space<vmem>>, vector<8x128xf32>
    %c1_i32 = arith.constant 1 : i32
    %4 = arith.muli %arg0, %c1_i32 : i32
    %5 = arith.addi %4, %arg1 : i32
    %c128_i32 = arith.constant 128 : i32
    %6 = arith.muli %5, %c128_i32 : i32
    %c16_i32 = arith.constant 16 : i32
    %7 = arith.subi %c16_i32, %6 : i32
    %8 = tpu.iota {dimensions = array<i32: 1>} : vector<8x128xi32>
    %9 = vector.broadcast %7 : i32 to vector<8x128xi32>
    %10 = arith.cmpi slt, %8, %9 : vector<8x128xi32>
    %cst = arith.constant 0.000000e+00 : f32
    %11 = vector.broadcast %cst : f32 to vector<8x128xf32>
    %12 = arith.select %10, %3, %11 : vector<8x128xi1>, vector<8x128xf32>
    %c0_2 = arith.constant 0 : index
    %c0_3 = arith.constant 0 : index
    %13 = vector.load %arg4[%c0_2, %c0_3] : memref<8x8xf32, #tpu.memory_space<vmem>>, vector<8x8xf32>
    "tpu.trace_start"() <{level = 10 : i32, message = "cn,dn->cd"}> : () -> ()
    %cst_4 = arith.constant dense<0.000000e+00> : vector<8x8xf32>
    %14 = tpu.matmul %12, %12, %cst_4 {dimension_numbers = #tpu.dot_dimension_numbers<[1], [1], [0], [0], [0, 0, 1, 0], [], []>} : vector<8x128xf32>, vector<8x128xf32>, vector<8x8xf32> -> vector<8x8xf32>
    "tpu.trace_stop"() : () -> ()
    %15 = arith.addf %13, %14 : vector<8x8xf32>
    %c0_5 = arith.constant 0 : index
    %c0_6 = arith.constant 0 : index
    %16 = vector.load %arg4[%c0_5, %c0_6] : memref<8x8xf32, #tpu.memory_space<vmem>>, vector<8x8xf32>
    tpu.vector_store %arg4[%c0_5, %c0_6], %15 {strides = array<i32>} : memref<8x8xf32, #tpu.memory_space<vmem>>, vector<8x8xf32>,
    %c0_i32_7 = arith.constant 0 : i32
    %17 = arith.cmpi eq, %arg1, %c0_i32_7 : i32
    %18 = arith.extui %17 : i1 to i32
    %c0_i32_8 = arith.constant 0 : i32
    %19 = arith.cmpi ne, %18, %c0_i32_8 : i32
    scf.if %19 {
      %c0_9 = arith.constant 0 : index
      %c0_10 = arith.constant 0 : index
      %20 = vector.load %arg4[%c0_9, %c0_10] : memref<8x8xf32, #tpu.memory_space<vmem>>, vector<8x8xf32>
      %21 = vector.shape_cast %20 : vector<8x8xf32> to vector<1x8x8xf32>
      %c0_11 = arith.constant 0 : index
      %c0_12 = arith.constant 0 : index
      %c0_13 = arith.constant 0 : index
      %22 = vector.load %arg3[%c0_11, %c0_12, %c0_13] : memref<1x8x8xf32, #tpu.memory_space<vmem>>, vector<1x8x8xf32>
      tpu.vector_store %arg3[%c0_11, %c0_12, %c0_13], %21 {strides = array<i32>} : memref<1x8x8xf32, #tpu.memory_space<vmem>>, vector<1x8x8xf32>,
    } else {
    }
    return
  }
  func.func @transform_0(%arg0: i32, %arg1: i32) -> (i32, i32) {
    %c1_i32 = arith.constant 1 : i32
    %0 = arith.muli %arg0, %c1_i32 : i32
    %1 = arith.addi %0, %arg1 : i32
    %c0_i32 = arith.constant 0 : i32
    %c0_i32_0 = arith.constant 0 : i32
    return %c0_i32, %1 : i32, i32
  }
  func.func @transform_1(%arg0: i32, %arg1: i32) -> (i32, i32, i32) {
    %c0_i32 = arith.constant 0 : i32
    %c0_i32_0 = arith.constant 0 : i32
    %c0_i32_1 = arith.constant 0 : i32
    return %arg0, %c0_i32, %c0_i32_0 : i32, i32, i32
  }
}

</mosaic_0001>

<llo_original>
// kernel: tpu_custom_call.1
$region0: #{tpu_custom_call.1}
  #allocation0 [shape = 'u32[]', space=smem, size = 0x4, offset = 0x4, fixed_abs, tag = 'smem constant byte address 0x4 - core index']
  #allocation1 [shape = 'u32[72,128]{1,0:T(1,128)}', space=vmem, size = 0x9000, scoped, tag = 'internal scratch']
  #allocation2 [shape = 'f32[8,8]{1,0:T(8,128)}', space=vmem, size = 0x1000, scoped, tag = 'scratch operand']
  %s0 = inlined_call_operand.hbm [shape: f32[8,16], index: 0, kind: input, shape index: {}]
  %s1 = inlined_call_operand.hbm [shape: f32[1,8,8], index: 1, kind: output, shape index: {}]
  %s2 = sld [smem:[#allocation0]]
  $region26: #{tpu_custom_call.1} parent=0
    _
  %s4 = ssub.s32 1, %s2
  %s5 = scalar_select 0, %s4, %s2
  $region1: #{tpu_custom_call.1} parent=0
    #allocation3 [shape = 'u8[4096]{0}', space=vmem, size = 0x1000, scoped, tag = 'input window, operand 0, single buffered']
    #allocation4 [shape = 's32[1]{0}', space=sflag, size = 0x4, scoped, tag = 'scoped memory for tpu_custom_call.1']
    #allocation5 [shape = 's32[1]{0}', space=sflag, size = 0x4, scoped, tag = 'scoped memory for tpu_custom_call.1']
    #allocation6 [shape = 'u8[4096]{0}', space=vmem, size = 0x1000, scoped, tag = 'output window, operand 0, single buffered']
    %6 = vsyncpa [#allocation4], 0
    %7 = vsyncpa [#allocation5], 0
    // Predicated region
    $region2: #{tpu_custom_call.1} parent=1 // pred_check
      _
    $region3: #{tpu_custom_call.1} parent=1 // pred_check_branch
      %9 = sbr.rel (0) target = $region5
    $region4: #{tpu_custom_call.1} parent=1 // pred_region
      %s10 = sadd.s32 0, 0
      %12 = vsyncadd [#allocation4], 0
      %s13 = smul.addr %s10, 8
      %s14 = scalar_lea.hbm %s0, %s13
      %s16 = sshll.u32 %s14, 4
      %s17 = int_to_ptr.hbm [resolvable:$true] %s16
      %s18 = sshll.u32 [#allocation3], 4
      %s19 = int_to_ptr.vmem [resolvable:$true] %s18
      %21 = dma.hbm_to_vmem [thread:$0]  %s17, 128, %s19, [#allocation4]
    $region5: #{tpu_custom_call.1} parent=1 // pred_fallthru
      _
    // Predicated region
    $region6: #{tpu_custom_call.1} parent=1 // pred_check
      _
    $region7: #{tpu_custom_call.1} parent=1 // pred_check_branch
      %23 = sbr.rel (0) target = $region9
    $region8: #{tpu_custom_call.1} parent=1 // pred_region
      %25 = dma.done [#allocation4], 128
    $region9: #{tpu_custom_call.1} parent=1 // pred_fallthru
      _
    %s26 = sadd.s32 0, 0
    %p27 = scmp.eq.s32.totalorder 0, 0
    // Predicated region
    $region10: #{tpu_custom_call.1} parent=1 // pred_check
      %p28 = pneg %p27
    $region11: #{tpu_custom_call.1} parent=1 // pred_check_branch
      %30 = sbr.rel (%p28) target = $region13
    $region12: #{tpu_custom_call.1} parent=1 // pred_region
      %vm31 = vcmask 64512
      %32 = vst.msk [vmem:[#allocation2] sm:$0xff] %vm31, 0.0
    $region13: #{tpu_custom_call.1} parent=1 // pred_fallthru
      _
    %v33 = vld [vmem:[#allocation3] sm:$0xff]
    %s34 = sadd.s32 0, 0
    %s35 = smul.u32 %s34, 128
    %s36 = ssub.s32 16, %s35
    %v37 = vlaneseq
    %v38 = vand.u32 %v37, 127
    %v39 = vstv %s36
    %vm40 = vcmp.lt.s32.totalorder %v38, %v39
    %v41 = vsel %vm40, %v33, 0.0
    %v42 = vld [vmem:[#allocation2] sm:$0xff]
    %43 = vmatpush.xpose.msra.mxu0 0.0
    %44 = vmatpush.xpose.msra.mxu0 0.0
    %45 = vmatpush.xpose.msra.mxu0 0.0
    %46 = vmatpush.xpose.msra.mxu0 0.0
    %47 = vmatpush.xpose.msra.mxu0 0.0
    %48 = vmatpush.xpose.msra.mxu0 0.0
    %49 = vmatpush.xpose.msra.mxu0 0.0
    %50 = vmatpush.xpose.msra.mxu0 0.0
    %51 = vmatpush.xpose.msra.mxu0 0.0
    %52 = vmatpush.xpose.msra.mxu0 0.0
    %53 = vmatpush.xpose.msra.mxu0 0.0
    %54 = vmatpush.xpose.msra.mxu0 0.0
    %55 = vmatpush.xpose.msra.mxu0 0.0
    %56 = vmatpush.xpose.msra.mxu0 0.0
    %57 = vmatpush.xpose.msra.mxu0 0.0
    %58 = vmatpush.xpose.msra.mxu0 %v41
    %59 = vmatmul.f32.gmra.mxu0 %v41
    %v60 = vpop.f32.mrf.mxu0
    %v61 = vadd.f32 0.0, %v60
    %62 = vdwg.mxu0
    %v63 = vadd.f32 %v42, %v61
    %vm64 = vcmask 64512
    %65 = vst.msk [vmem:[#allocation2] sm:$0xff] %vm64, %v63
    // Predicated region
    $region14: #{tpu_custom_call.1} parent=1 // pred_check
      %p66 = pneg %p27
    $region15: #{tpu_custom_call.1} parent=1 // pred_check_branch
      %68 = sbr.rel (%p66) target = $region17
    $region16: #{tpu_custom_call.1} parent=1 // pred_region
      %v69 = vld [vmem:[#allocation2] sm:$0xff]
      %70 = vst.msk [vmem:[#allocation6] sm:$0xff] %vm64, %v69
    $region17: #{tpu_custom_call.1} parent=1 // pred_fallthru
      _
    // Predicated region
    $region18: #{tpu_custom_call.1} parent=1 // pred_check
      _
    $region19: #{tpu_custom_call.1} parent=1 // pred_check_branch
      %72 = sbr.rel (0) target = $region21
    $region20: #{tpu_custom_call.1} parent=1 // pred_region
      %74 = vsyncadd [#allocation5], 0
      %s76 = sshll.u32 [#allocation6], 4
      %s77 = int_to_ptr.vmem [resolvable:$true] %s76
      %s78 = sshll.u32 %s1, 4
      %s79 = int_to_ptr.hbm [resolvable:$true] %s78
      %81 = dma.vmem_to_hbm [thread:$0]  %s77, 128, %s79, [#allocation5]
    $region21: #{tpu_custom_call.1} parent=1 // pred_fallthru
      _
    // Predicated region
    $region22: #{tpu_custom_call.1} parent=1 // pred_check
      _
    $region23: #{tpu_custom_call.1} parent=1 // pred_check_branch
      %83 = sbr.rel (0) target = $region25
    $region24: #{tpu_custom_call.1} parent=1 // pred_region
      %85 = dma.done [#allocation5], 128
    $region25: #{tpu_custom_call.1} parent=1 // pred_fallthru
      _
    %86 = vsyncpa [#allocation4], 1
    %87 = vsyncpa [#allocation5], 1

</llo_original>
